<compile_context>
chip_gen: v7x
topology: tpu7x:2x2x1
jax: 0.10.0
libtpu: 0.0.40
codegen_flags: <defaults>
</compile_context>

<pallas_src>
import functools
import math

import jax
import jax.numpy as jnp
from jax import lax
from jax.experimental import pallas as pl
from jax.experimental.pallas import tpu as pltpu


# --------------------------------------------------------------------------
# Parameter / buffer construction (glue, plain JAX) -- mirrors __init__.
# Pass dtype=<activation dtype> here so no per-call cast is needed.
# --------------------------------------------------------------------------
def make_positional_encoding(max_len: int, d_model: int, dtype=jnp.float32):
    position = jnp.arange(max_len, dtype=jnp.float32)[:, None]           # (max_len, 1)
    div_term = jnp.exp(
        jnp.arange(0, d_model, 2, dtype=jnp.float32)
        * (-math.log(10000.0) / d_model)
    )                                                                     # (d_model//2,)
    pe = jnp.zeros((max_len, d_model), jnp.float32)
    pe = pe.at[:, 0::2].set(jnp.sin(position * div_term))
    pe = pe.at[:, 1::2].set(jnp.cos(position * div_term))
    return pe.astype(dtype)                                               # (max_len, d_model)


# --------------------------------------------------------------------------
# Generation-dependent block budget (glue; safe default if query fails).
# --------------------------------------------------------------------------
def _default_block_bytes():
    try:
        dev = jax.devices()[0]
        if dev.platform == "tpu":
            kind = dev.device_kind.lower()
            if "v5 lite" in kind or "v5e" in kind or "v5litepod" in kind:
                return 2 << 20          # 16 MiB default scoped VMEM -> ~8 MiB footprint
            return 4 << 20              # v6e / v7x: 32 MiB scoped -> ~16-18 MiB footprint
    except Exception:
        pass
    return 2 << 20


# --------------------------------------------------------------------------
# Tile selection: lane-dense column tiles, VMEM-budget-capped row tiles.
# Divisibility is NOT required; edge blocks are masked by Pallas (cdiv grid).
# --------------------------------------------------------------------------
def _pick_tiles(B: int, C: int, itemsize: int, block_bytes: int):
    lane = 128
    sub = max(8, 32 // max(itemsize, 1))          # 8 f32, 16 bf16, 32 int8/fp8

    # Widest column tile we could ever use (multiple of 128, <= C).
    max_tc = (C // lane) * lane if C > lane else C

    # Row tile: big enough to amortize per-step overhead, small enough that a
    # >=512-lane (when C allows) column tile still fits the byte budget.
    target_lanes = min(max(max_tc, lane), 512)
    row_cap = max(sub, (block_bytes // (target_lanes * itemsize)) // sub * sub)
    if B <= sub:
        tR = B                                    # full-extent dim is always legal
    else:
        tR = max(sub, (min(B, row_cap) // sub) * sub)

    # Column tile: largest 128-multiple within the byte budget for tR rows.
    if C <= lane:
        tC = C                                    # full extent (only here are stores masked)
    else:
        cap = max(lane, (block_bytes // (tR * itemsize)) // lane * lane)
        tC = min(cap, max_tc)
    return tR, tC


# --------------------------------------------------------------------------
# Portable counter-based hash PRNG (lowbias32-style) using only VPU int ops.
# Works both under Mosaic lowering and in interpret mode.
# --------------------------------------------------------------------------
_M1 = 0x7FEB352D                       # lowbias32 multipliers (int32-wrapped)
_M2 = 0x846CA68B - (1 << 32)
_GOLD = 0x9E3779B1 - (1 << 32)         # golden-ratio constant


def _mix32(v):
    v = (v ^ lax.shift_right_logical(v, 16)) * jnp.int32(_M1)
    v = (v ^ lax.shift_right_logical(v, 15)) * jnp.int32(_M2)
    return v ^ lax.shift_right_logical(v, 16)


# --------------------------------------------------------------------------
# Kernels: y = x + pe (pe broadcast over batch rows), optional inverted dropout.
# --------------------------------------------------------------------------
def _pe_add_kernel(x_ref, pe_ref, o_ref):
    # x_ref/o_ref: (tR, tC) tile of the flattened (B, S*D) view; pe_ref: (1, tC).
    o_ref[...] = (x_ref[...] + pe_ref[...]).astype(o_ref.dtype)


def _pe_add_dropout_kernel(seed_ref, x_ref, pe_ref, o_ref, *, rate: float):
    y = x_ref[...] + pe_ref[...]                       # compute stays in x.dtype

    tR, tC = x_ref.shape
    row0 = pl.program_id(1) * tR                       # grid = (cols, rows)
    col0 = pl.program_id(0) * tC
    rows = lax.broadcasted_iota(jnp.int32, y.shape, 0) + row0
    cols = lax.broadcasted_iota(jnp.int32, y.shape, 1) + col0
    seed = seed_ref[0]

    # Hash keyed on (seed, global row, global col): deterministic and
    # independent of the tiling; int32 multiply wraps, shifts are logical.
    h = _mix32(rows + seed * jnp.int32(_GOLD))
    h = _mix32(h ^ (cols * jnp.int32(_M2)))
    u = lax.shift_right_logical(h, 8).astype(jnp.float32) * jnp.float32(1.0 / (1 << 24))
    keep = u >= jnp.float32(rate)                      # P(keep) = 1 - rate

    scale = jnp.asarray(1.0 / (1.0 - rate), y.dtype)
    y = jnp.where(keep, y * scale, jnp.zeros_like(y))
    o_ref[...] = y.astype(o_ref.dtype)


# --------------------------------------------------------------------------
# Wrapper (matches PositionalEncoding.forward).
# --------------------------------------------------------------------------
def positional_encoding_fwd(x, pe_full, *, rate: float = 0.1,
                            training: bool = False, seed: int = 0):
    """x: (B, S, D); pe_full: (max_len, D).  Returns (B, S, D)."""
    B, S, D = x.shape
    use_dropout = bool(training) and rate > 0.0
    if use_dropout and rate >= 1.0:                    # torch: everything dropped
        return jnp.zeros_like(x)

    pe = pe_full[:S]                                   # pe[:, :x.size(1)]
    if pe.dtype != x.dtype:                            # normally baked at init -> no-op
        pe = pe.astype(x.dtype)

    # Lane-dense flattened view: rows = batch, cols = S*D (contiguous reshape).
    C = S * D
    x2 = x.reshape(B, C)
    pe2 = pe.reshape(1, C)

    itemsize = jnp.dtype(x.dtype).itemsize
    block_bytes = _default_block_bytes()
    tR, tC = _pick_tiles(B, C, itemsize, block_bytes)
    n_c, n_r = pl.cdiv(C, tC), pl.cdiv(B, tR)

    # v7x: guarantee >=2 column blocks on non-trivial workloads so both
    # TensorCores get work and each pe column block is still read exactly once.
    if n_c == 1 and C >= 256 and B * C * itemsize >= (1 << 20):
        tC = max(128, (pl.cdiv(C, 2) // 128) * 128)
        n_c = pl.cdiv(C, tC)

    # Rows innermost -> pe block index unchanged across the inner axis -> pe is
    # streamed from HBM once.  Rows only become the "parallel" core-split axis
    # when there is a single column block.
    dim_sems = ("parallel", "parallel" if n_c == 1 else "arbitrary")

    if use_dropout:
        kernel = functools.partial(_pe_add_dropout_kernel, rate=float(rate))
        grid_spec = pltpu.PrefetchScalarGridSpec(
            num_scalar_prefetch=1,                     # dropout seed (SMEM scalar)
            grid=(n_c, n_r),
            in_specs=[
                pl.BlockSpec((tR, tC), lambda c, r, s: (r, c)),   # x
                pl.BlockSpec((1, tC),  lambda c, r, s: (0, c)),   # pe (shared over rows)
            ],
            out_specs=pl.BlockSpec((tR, tC), lambda c, r, s: (r, c)),
        )
        args = (jnp.asarray([seed], dtype=jnp.int32), x2, pe2)
    else:
        kernel = _pe_add_kernel
        grid_spec = pltpu.PrefetchScalarGridSpec(
            num_scalar_prefetch=0,                     # eval fast path: no dead prefetch
            grid=(n_c, n_r),
            in_specs=[
                pl.BlockSpec((tR, tC), lambda c, r: (r, c)),      # x
                pl.BlockSpec((1, tC),  lambda c, r: (0, c)),      # pe (shared over rows)
            ],
            out_specs=pl.BlockSpec((tR, tC), lambda c, r: (r, c)),
        )
        args = (x2, pe2)

    out2 = pl.pallas_call(
        kernel,
        out_shape=jax.ShapeDtypeStruct((B, C), x.dtype),
        grid_spec=grid_spec,
        compiler_params=pltpu.CompilerParams(dimension_semantics=dim_sems),
    )(*args)

    return out2.reshape(B, S, D)


# --------------------------------------------------------------------------
# Demo / self-check
# --------------------------------------------------------------------------
if __name__ == "__main__":
    B, S, D = 2, 8, 32          # batch, seq, d_model
    MAX_LEN = 64
    DROPOUT_P = 0.1

    key = jax.random.PRNGKey(0)
    x = jax.random.normal(key, (B, S, D), dtype=jnp.float32)

    pe_full = make_positional_encoding(MAX_LEN, D, dtype=x.dtype)

    # --- eval-mode forward (nn.Dropout is identity in eval()) ---------------
    out = positional_encoding_fwd(x, pe_full, rate=DROPOUT_P, training=False)
    out = jax.block_until_ready(out)

    ref = x + pe_full[None, :S, :]
    assert out.shape == (B, S, D)
    assert out.dtype == x.dtype
    assert jnp.allclose(out, ref, atol=1e-6, rtol=1e-6), "eval mismatch vs reference"

    # --- train-mode forward: every element is either 0 or (x+pe)/(1-p) ------
    out_tr = positional_encoding_fwd(x, pe_full, rate=DROPOUT_P,
                                     training=True, seed=123)
    out_tr = jax.block_until_ready(out_tr)
    scaled = ref / (1.0 - DROPOUT_P)
    ok = jnp.all((out_tr == 0) | jnp.isclose(out_tr, scaled, rtol=1e-5, atol=1e-6))
    assert bool(ok), "dropout output structure mismatch"
    # some (but not all) elements should be dropped at p=0.1 over 512 elements
    n_zero = int(jnp.sum(out_tr == 0))
    assert 0 < n_zero < out_tr.size, "dropout mask looks degenerate"

    print("KERNEL_OK")
</pallas_src>

<mosaic_0001>
module attributes {stable_mosaic.version = 11 : i64} {
  func.func @_pe_add_kernel(%arg0: i32, %arg1: i32, %arg2: memref<2x256xf32, #tpu.memory_space<vmem>>, %arg3: memref<1x256xf32, #tpu.memory_space<vmem>>, %arg4: memref<2x256xf32, #tpu.memory_space<vmem>>) attributes {dimension_semantics = [#tpu.dimension_semantics<parallel>, #tpu.dimension_semantics<parallel>], iteration_bounds = array<i64: 1, 1>, scalar_prefetch = 0 : i64, scratch_operands = 0 : i64, tpu.core_type = #tpu.core_type<tc>, window_params = [{transform_indices = @transform_0, window_bounds = array<i64: 2, 256>}, {transform_indices = @transform_1, window_bounds = array<i64: 1, 256>}, {transform_indices = @transform_2, window_bounds = array<i64: 2, 256>}]} {
    %c0 = arith.constant 0 : index
    %c0_0 = arith.constant 0 : index
    %0 = vector.load %arg2[%c0, %c0_0] : memref<2x256xf32, #tpu.memory_space<vmem>>, vector<2x256xf32>
    %c0_1 = arith.constant 0 : index
    %c0_2 = arith.constant 0 : index
    %1 = vector.load %arg3[%c0_1, %c0_2] : memref<1x256xf32, #tpu.memory_space<vmem>>, vector<1x256xf32>
    %2 = vector.broadcast %1 : vector<1x256xf32> to vector<2x256xf32>
    %3 = arith.addf %0, %2 : vector<2x256xf32>
    %c0_3 = arith.constant 0 : index
    %c0_4 = arith.constant 0 : index
    %4 = vector.load %arg4[%c0_3, %c0_4] : memref<2x256xf32, #tpu.memory_space<vmem>>, vector<2x256xf32>
    tpu.vector_store %arg4[%c0_3, %c0_4], %3 {strides = array<i32>} : memref<2x256xf32, #tpu.memory_space<vmem>>, vector<2x256xf32>,
    return
  }
  func.func @transform_0(%arg0: i32, %arg1: i32) -> (i32, i32) {
    %c0_i32 = arith.constant 0 : i32
    return %arg1, %arg0 : i32, i32
  }
  func.func @transform_1(%arg0: i32, %arg1: i32) -> (i32, i32) {
    %c0_i32 = arith.constant 0 : i32
    %c0_i32_0 = arith.constant 0 : i32
    return %c0_i32, %arg0 : i32, i32
  }
  func.func @transform_2(%arg0: i32, %arg1: i32) -> (i32, i32) {
    %c0_i32 = arith.constant 0 : i32
    return %arg1, %arg0 : i32, i32
  }
}

</mosaic_0001>

<llo_original>
// kernel: tpu_custom_call.1
$region0: #{tpu_custom_call.1}
  #allocation0 [shape = 'u32[]', space=smem, size = 0x4, offset = 0x4, fixed_abs, tag = 'smem constant byte address 0x4 - core index']
  #allocation1 [shape = 'u32[144,128]{1,0:T(1,128)}', space=vmem, size = 0x12000, scoped, tag = 'internal scratch']
  %s0 = inlined_call_operand.hbm [shape: f32[2,256], index: 0, kind: input, shape index: {}]
  %s1 = inlined_call_operand.vmem [shape: f32[1,256], index: 1, kind: input, shape index: {}]
  %s2 = inlined_call_operand.hbm [shape: f32[2,256], index: 2, kind: output, shape index: {}]
  %s3 = sld [smem:[#allocation0]]
  $region22: #{tpu_custom_call.1} parent=0
    _
  %s5 = ssub.s32 1, %s3
  %s6 = scalar_select 0, %s5, %s3
  $region1: #{tpu_custom_call.1} parent=0
    #allocation2 [shape = 'u8[2048]{0}', space=vmem, size = 0x800, scoped, tag = 'input window, operand 0, single buffered']
    #allocation3 [shape = 's32[1]{0}', space=sflag, size = 0x4, scoped, tag = 'scoped memory for tpu_custom_call.1']
    #allocation4 [shape = 's32[1]{0}', space=sflag, size = 0x4, scoped, tag = 'scoped memory for tpu_custom_call.1']
    #allocation5 [shape = 'u8[2048]{0}', space=vmem, size = 0x800, scoped, tag = 'output window, operand 0, single buffered']
    %7 = vsyncpa [#allocation3], 0
    %8 = vsyncpa [#allocation4], 0
    // Predicated region
    $region2: #{tpu_custom_call.1} parent=1 // pred_check
      _
    $region3: #{tpu_custom_call.1} parent=1 // pred_check_branch
      %10 = sbr.rel (0) target = $region5
    $region4: #{tpu_custom_call.1} parent=1 // pred_region
      %s12 = ssub.s32 64, 64
      %13 = vsyncadd [#allocation3], %s12
      %s15 = sshll.u32 [#allocation2], 4
      %s16 = int_to_ptr.vmem [resolvable:$true] %s15
      %18 = dma.hbm_to_vmem [thread:$0]  %s0, 64, %s16, [#allocation3]
    $region5: #{tpu_custom_call.1} parent=1 // pred_fallthru
      _
    // Predicated region
    $region6: #{tpu_custom_call.1} parent=1 // pred_check
      _
    $region7: #{tpu_custom_call.1} parent=1 // pred_check_branch
      %20 = sbr.rel (0) target = $region9
    $region8: #{tpu_custom_call.1} parent=1 // pred_region
      _
    $region9: #{tpu_custom_call.1} parent=1 // pred_fallthru
      _
    // Predicated region
    $region10: #{tpu_custom_call.1} parent=1 // pred_check
      _
    $region11: #{tpu_custom_call.1} parent=1 // pred_check_branch
      %22 = sbr.rel (0) target = $region13
    $region12: #{tpu_custom_call.1} parent=1 // pred_region
      %23 = dma.done [#allocation3], 64
    $region13: #{tpu_custom_call.1} parent=1 // pred_fallthru
      _
    %v24 = vld [vmem:[#allocation2] sm:$0xf]
    %v25 = vld [vmem:[%s1] sm:$0x3]
    %v27 = vlaneseq
    %v28 = vshrl.u32 %v27, 7
    %v29 = vsub.s32 0, %v28
    %v30 = vrot.slane %v25, %v29
    %v31 = vlaneseq
    %v32 = vshrl.u32 %v31, 7
    %v33 = vsub.s32 1, %v32
    %v34 = vrot.slane %v25, %v33
    %v35 = vcombine.low %v30, %v34
    %v37 = vunpack.c.l.s4 1983009808
    %v38 = vunpack.c.0.s8 %v37
    %v39 = vlaneseq
    %v40 = vshrl.u32 %v39, 7
    %v41 = vsub.s32 %v38, %v40
    %v42 = vrot.slane %v35, %v41
    %v44 = vadd.f32 %v24, %v42
    %45 = vst [vmem:[#allocation5] sm:$0xf] %v44
    // Predicated region
    $region14: #{tpu_custom_call.1} parent=1 // pred_check
      _
    $region15: #{tpu_custom_call.1} parent=1 // pred_check_branch
      %47 = sbr.rel (0) target = $region17
    $region16: #{tpu_custom_call.1} parent=1 // pred_region
      %s49 = ssub.s32 64, 64
      %50 = vsyncadd [#allocation4], %s49
      %s52 = sshll.u32 [#allocation5], 4
      %s53 = int_to_ptr.vmem [resolvable:$true] %s52
      %55 = dma.vmem_to_hbm [thread:$0]  %s53, 64, %s2, [#allocation4]
    $region17: #{tpu_custom_call.1} parent=1 // pred_fallthru
      _
    // Predicated region
    $region18: #{tpu_custom_call.1} parent=1 // pred_check
      _
    $region19: #{tpu_custom_call.1} parent=1 // pred_check_branch
      %57 = sbr.rel (0) target = $region21
    $region20: #{tpu_custom_call.1} parent=1 // pred_region
      %58 = dma.done [#allocation4], 64
    $region21: #{tpu_custom_call.1} parent=1 // pred_fallthru
      _
    %59 = vsyncpa [#allocation3], 1
    %60 = vsyncpa [#allocation4], 1

</llo_original>
